<compile_context>
chip_gen: v6e
topology: v6e:2x2x1
jax: 0.10.0
libtpu: 0.0.40
codegen_flags: <defaults>
</compile_context>

<pallas_src>
import functools

import jax
import jax.numpy as jnp
from jax import lax
from jax.experimental import pallas as pl
from jax.experimental.pallas import tpu as pltpu


def _xclaim_kernel(xq_ref, xk_ref, wp_ref, bp_ref, wf_ref, out_ref,
                   projq_ref, m_ref, l_ref, acc_ref, *, scale, inv_s):
    # Grid: (b, qi, ki) -- ki (kv tiles) innermost / reduction axis.
    qi = pl.program_id(1)
    ki = pl.program_id(2)
    n_kv = pl.num_programs(2)
    mxu_dt = xq_ref.dtype  # bf16 on v6e/v7x when the wrapper casts inputs

    # Zero the resident per-batch logits block exactly once.
    @pl.when((qi == 0) & (ki == 0))
    def _():
        out_ref[...] = jnp.zeros(out_ref.shape, out_ref.dtype)

    # Fresh q tile: project queries once, reuse across every kv step;
    # reset the online-softmax state.
    @pl.when(ki == 0)
    def _():
        projq_ref[...] = (
            jnp.dot(xq_ref[0], wp_ref[...], preferred_element_type=jnp.float32)
            + bp_ref[...])                                          # (tq, H)
        m_ref[...] = jnp.full(m_ref.shape, -jnp.inf, dtype=m_ref.dtype)
        l_ref[...] = jnp.zeros(l_ref.shape, l_ref.dtype)
        acc_ref[...] = jnp.zeros(acc_ref.shape, acc_ref.dtype)

    # Project this kv tile (q = k = v = projected x).
    projk = (jnp.dot(xk_ref[0], wp_ref[...], preferred_element_type=jnp.float32)
             + bp_ref[...])                                          # (tk, H)

    # Scores: 1/sqrt(H) folded into q; NT contraction on the feature axis.
    # TODO(synk): confirm via pl.lower_as_mlir that Mosaic emits no vxpose
    # for this NT dot_general at production H/S; if it does, pre-transpose
    # projk once per kv tile instead.
    q = projq_ref[...] * scale
    s = lax.dot_general(q.astype(mxu_dt), projk.astype(mxu_dt),
                        (((1,), (1,)), ((), ())),
                        preferred_element_type=jnp.float32)          # (tq, tk)

    # Online-softmax update: VMEM bounded to O(tq*tk), never O(S*S).
    m_prev = m_ref[...]
    m_new = jnp.maximum(m_prev, jnp.max(s, axis=-1, keepdims=True))
    alpha = jnp.exp(m_prev - m_new)
    p = jnp.exp(s - m_new)
    l_ref[...] = alpha * l_ref[...] + jnp.sum(p, axis=-1, keepdims=True)
    acc_ref[...] = alpha * acc_ref[...] + jnp.dot(
        p.astype(mxu_dt), projk.astype(mxu_dt),
        preferred_element_type=jnp.float32)
    m_ref[...] = m_new

    # Last kv tile: normalize, mean-pool this q tile's rows (sublane / XLU
    # reduction -- no M=1 matmul, no broadcast materialization), apply the
    # fc head and accumulate into the per-batch logits block.
    @pl.when(ki == n_kv - 1)
    def _():
        # Exact reciprocal for numerical fidelity; approx=True (EUP) is fine
        # for inference-only use.
        ctx = acc_ref[...] * pl.reciprocal(l_ref[...], approx=False)  # (tq, H)
        pooled = jnp.sum(ctx, axis=0, keepdims=True) * inv_s          # (1, H)
        partial = jnp.dot(pooled.astype(wf_ref.dtype), wf_ref[...],
                          preferred_element_type=jnp.float32)         # (1, Op)
        out_ref[...] += partial.reshape(out_ref.shape)


def xclaim_forward(x, w_proj, b_proj, w_fc, *, tq=None, tk=None,
                   use_bf16_mxu=False):
    B, S, IN = x.shape
    H = w_proj.shape[1]
    O = w_fc.shape[1]
    scale = 1.0 / (H ** 0.5)

    # Tile sizes: small S -> single tile (equal-to-full-dim blocks sidestep
    # the (8,128) divisibility rule).  Large S -> 256-wide tiles fill the
    # v6e/v7x 256x256 MXU; drop to 128 on v5e's 128-wide MXU.
    if tq is None:
        tq = S if S <= 256 else 256
    if tk is None:
        tk = S if S <= 256 else 256
    assert S % tq == 0 and S % tk == 0, "S must divide into the chosen tiles"
    n_q, n_kv = S // tq, S // tk

    # Lane-dense output: pad the fc output dim to a multiple of 128 so the
    # logits store is an unmasked vst instead of a masked partial store.
    O_pad = pl.cdiv(O, 128) * 128
    w_fc_p = jnp.pad(w_fc, ((0, 0), (0, O_pad - O))) if O_pad != O else w_fc

    if use_bf16_mxu:
        # ~2x MXU rate + half the operand footprint on v6e/v7x; accumulation
        # stays f32 via preferred_element_type. Keep off for strict f32 runs.
        x = x.astype(jnp.bfloat16)
        w_proj = w_proj.astype(jnp.bfloat16)
        w_fc_p = w_fc_p.astype(jnp.bfloat16)

    kernel = functools.partial(_xclaim_kernel, scale=scale, inv_s=1.0 / S)

    grid = (B, n_q, n_kv)
    in_specs = [
        pl.BlockSpec((1, tq, IN), lambda b, qi, ki: (b, qi, 0)),   # x (q tile)
        pl.BlockSpec((1, tk, IN), lambda b, qi, ki: (b, ki, 0)),   # x (kv tile)
        pl.BlockSpec((IN, H), lambda b, qi, ki: (0, 0)),           # w_proj
        pl.BlockSpec((1, H), lambda b, qi, ki: (0, 0)),            # b_proj
        pl.BlockSpec((H, O_pad), lambda b, qi, ki: (0, 0)),        # w_fc
    ]
    out_specs = pl.BlockSpec((1, 1, O_pad), lambda b, qi, ki: (b, 0, 0))

    scratch_shapes = [
        pltpu.VMEM((tq, H), jnp.float32),   # projected q tile
        pltpu.VMEM((tq, 1), jnp.float32),   # running max m
        pltpu.VMEM((tq, 1), jnp.float32),   # running denom l
        pltpu.VMEM((tq, H), jnp.float32),   # unnormalized context accumulator
    ]

    # VMEM budget: double-buffered blocks + scratch with margin, clamped to
    # stay under every generation's physical limit (v7x: 64 MiB per TC).
    itemsize = x.dtype.itemsize
    blk_bytes = ((tq * IN + tk * IN) * itemsize
                 + (IN * H + H) * itemsize + H * O_pad * itemsize
                 + O_pad * 4)
    scratch_bytes = (2 * tq * H + 2 * tq) * 4
    vmem_limit = int(min(max(4 * (2 * blk_bytes + scratch_bytes), 16 << 20),
                         64 << 20))

    cost = pl.CostEstimate(
        flops=int(4 * B * S * IN * H + 4 * B * S * S * H
                  + 2 * B * n_q * H * O_pad),
        transcendentals=int(B * S * S + 2 * B * S * n_kv),
        bytes_accessed=int(2 * B * S * IN * itemsize
                           + (IN * H + H + H * O_pad) * itemsize
                           + B * O_pad * 4),
    )

    out = pl.pallas_call(
        kernel,
        out_shape=jax.ShapeDtypeStruct((B, 1, O_pad), jnp.float32),
        grid_spec=pltpu.PrefetchScalarGridSpec(
            num_scalar_prefetch=0,
            grid=grid,
            in_specs=in_specs,
            out_specs=out_specs,
            scratch_shapes=scratch_shapes),
        compiler_params=pltpu.CompilerParams(
            dimension_semantics=("parallel", "arbitrary", "arbitrary"),
            vmem_limit_bytes=vmem_limit),
        cost_estimate=cost,
    )(x, x, w_proj, b_proj, w_fc_p)

    return out[:, 0, :O]


def xclaim_reference(x, w_proj, b_proj, w_fc):
    proj = jnp.einsum("bsi,ih->bsh", x, w_proj) + b_proj
    scale = 1.0 / (w_proj.shape[1] ** 0.5)
    scores = jnp.einsum("bqh,bkh->bqk", proj, proj) * scale
    attn = jax.nn.softmax(scores, axis=-1)
    ctx = jnp.einsum("bqk,bkh->bqh", attn, proj)
    pooled = ctx.mean(axis=1)
    return pooled @ w_fc


if __name__ == "__main__":
    # Small shapes consistent with the module's forward.
    B, S, IN, H, O = 2, 8, 16, 32, 8

    key = jax.random.PRNGKey(0)
    kx, kwp, kbp, kwf = jax.random.split(key, 4)

    x = jax.random.normal(kx, (B, S, IN), dtype=jnp.float32)

    # Deterministic parameter init (PyTorch Linear-style uniform bounds).
    bound_p = 1.0 / (IN ** 0.5)
    w_proj = jax.random.uniform(kwp, (IN, H), jnp.float32, -bound_p, bound_p)
    b_proj = jax.random.uniform(kbp, (1, H), jnp.float32, -bound_p, bound_p)
    bound_f = 1.0 / (H ** 0.5)
    w_fc = jax.random.uniform(kwf, (H, O), jnp.float32, -bound_f, bound_f)

    logits = xclaim_forward(x, w_proj, b_proj, w_fc)
    jax.block_until_ready(logits)

    ref = xclaim_reference(x, w_proj, b_proj, w_fc)
    assert logits.shape == (B, O)
    err = float(jnp.max(jnp.abs(logits - ref)))
    assert jnp.allclose(logits, ref, atol=1e-4, rtol=1e-4), (
        f"max abs err {err}")

    print("KERNEL_OK")
</pallas_src>

<mosaic_0001>
module attributes {stable_mosaic.version = 11 : i64} {
  func.func @_xclaim_kernel(%arg0: i32, %arg1: i32, %arg2: i32, %arg3: memref<1x8x16xf32, #tpu.memory_space<vmem>>, %arg4: memref<1x8x16xf32, #tpu.memory_space<vmem>>, %arg5: memref<16x32xf32, #tpu.memory_space<vmem>>, %arg6: memref<1x32xf32, #tpu.memory_space<vmem>>, %arg7: memref<32x128xf32, #tpu.memory_space<vmem>>, %arg8: memref<1x1x128xf32, #tpu.memory_space<vmem>>, %arg9: memref<8x32xf32, #tpu.memory_space<vmem>>, %arg10: memref<8x1xf32, #tpu.memory_space<vmem>>, %arg11: memref<8x1xf32, #tpu.memory_space<vmem>>, %arg12: memref<8x32xf32, #tpu.memory_space<vmem>>) attributes {dimension_semantics = [#tpu.dimension_semantics<parallel>, #tpu.dimension_semantics<arbitrary>, #tpu.dimension_semantics<arbitrary>], iteration_bounds = array<i64: 2, 1, 1>, scalar_prefetch = 0 : i64, scratch_operands = 4 : i64, tpu.core_type = #tpu.core_type<tc>, window_params = [{transform_indices = @transform_0, window_bounds = array<i64: 1, 8, 16>}, {transform_indices = @transform_1, window_bounds = array<i64: 1, 8, 16>}, {pipeline_mode = #tpu.pipeline_mode<synchronous>, transform_indices = @transform_2, window_bounds = array<i64: 16, 32>}, {pipeline_mode = #tpu.pipeline_mode<synchronous>, transform_indices = @transform_3, window_bounds = array<i64: 1, 32>}, {pipeline_mode = #tpu.pipeline_mode<synchronous>, transform_indices = @transform_4, window_bounds = array<i64: 32, 128>}, {transform_indices = @transform_5, window_bounds = array<i64: 1, 1, 128>}]} {
    %c0_i32 = arith.constant 0 : i32
    %0 = arith.cmpi eq, %arg1, %c0_i32 : i32
    %c0_i32_0 = arith.constant 0 : i32
    %1 = arith.cmpi eq, %arg2, %c0_i32_0 : i32
    %2 = arith.andi %0, %1 : i1
    %3 = arith.extui %2 : i1 to i32
    %c0_i32_1 = arith.constant 0 : i32
    %4 = arith.cmpi ne, %3, %c0_i32_1 : i32
    scf.if %4 {
      %cst_31 = arith.constant 0.000000e+00 : f32
      %44 = vector.broadcast %cst_31 : f32 to vector<1x1x128xf32>
      %c0_32 = arith.constant 0 : index
      %c0_33 = arith.constant 0 : index
      %c0_34 = arith.constant 0 : index
      %45 = vector.load %arg8[%c0_32, %c0_33, %c0_34] : memref<1x1x128xf32, #tpu.memory_space<vmem>>, vector<1x1x128xf32>
      tpu.vector_store %arg8[%c0_32, %c0_33, %c0_34], %44 {strides = array<i32>} : memref<1x1x128xf32, #tpu.memory_space<vmem>>, vector<1x1x128xf32>,
    } else {
    }
    %c0_i32_2 = arith.constant 0 : i32
    %5 = arith.cmpi eq, %arg2, %c0_i32_2 : i32
    %6 = arith.extui %5 : i1 to i32
    %c0_i32_3 = arith.constant 0 : i32
    %7 = arith.cmpi ne, %6, %c0_i32_3 : i32
    scf.if %7 {
      %c0_31 = arith.constant 0 : index
      %c0_32 = arith.constant 0 : index
      %c0_33 = arith.constant 0 : index
      %44 = vector.load %arg3[%c0_31, %c0_32, %c0_33] : memref<1x8x16xf32, #tpu.memory_space<vmem>>, vector<1x8x16xf32>
      %45 = vector.shape_cast %44 : vector<1x8x16xf32> to vector<8x16xf32>
      %c0_34 = arith.constant 0 : index
      %c0_35 = arith.constant 0 : index
      %46 = vector.load %arg5[%c0_34, %c0_35] : memref<16x32xf32, #tpu.memory_space<vmem>>, vector<16x32xf32>
      %cst_36 = arith.constant dense<0.000000e+00> : vector<8x32xf32>
      %47 = tpu.matmul %45, %46, %cst_36 {dimension_numbers = #tpu.dot_dimension_numbers<[1], [0], [0], [1], [0, 0, 1, 1], [], []>} : vector<8x16xf32>, vector<16x32xf32>, vector<8x32xf32> -> vector<8x32xf32>
      %c0_37 = arith.constant 0 : index
      %c0_38 = arith.constant 0 : index
      %48 = vector.load %arg6[%c0_37, %c0_38] : memref<1x32xf32, #tpu.memory_space<vmem>>, vector<1x32xf32>
      %49 = vector.broadcast %48 : vector<1x32xf32> to vector<8x32xf32>
      %50 = arith.addf %47, %49 : vector<8x32xf32>
      %c0_39 = arith.constant 0 : index
      %c0_40 = arith.constant 0 : index
      %51 = vector.load %arg9[%c0_39, %c0_40] : memref<8x32xf32, #tpu.memory_space<vmem>>, vector<8x32xf32>
      tpu.vector_store %arg9[%c0_39, %c0_40], %50 {strides = array<i32>} : memref<8x32xf32, #tpu.memory_space<vmem>>, vector<8x32xf32>,
      %cst_41 = arith.constant 0xFF800000 : f32
      %52 = vector.broadcast %cst_41 : f32 to vector<8x1xf32>
      %c0_42 = arith.constant 0 : index
      %c0_43 = arith.constant 0 : index
      %53 = vector.load %arg10[%c0_42, %c0_43] : memref<8x1xf32, #tpu.memory_space<vmem>>, vector<8x1xf32>
      tpu.vector_store %arg10[%c0_42, %c0_43], %52 {strides = array<i32>} : memref<8x1xf32, #tpu.memory_space<vmem>>, vector<8x1xf32>,
      %cst_44 = arith.constant 0.000000e+00 : f32
      %54 = vector.broadcast %cst_44 : f32 to vector<8x1xf32>
      %c0_45 = arith.constant 0 : index
      %c0_46 = arith.constant 0 : index
      %55 = vector.load %arg11[%c0_45, %c0_46] : memref<8x1xf32, #tpu.memory_space<vmem>>, vector<8x1xf32>
      tpu.vector_store %arg11[%c0_45, %c0_46], %54 {strides = array<i32>} : memref<8x1xf32, #tpu.memory_space<vmem>>, vector<8x1xf32>,
      %cst_47 = arith.constant 0.000000e+00 : f32
      %56 = vector.broadcast %cst_47 : f32 to vector<8x32xf32>
      %c0_48 = arith.constant 0 : index
      %c0_49 = arith.constant 0 : index
      %57 = vector.load %arg12[%c0_48, %c0_49] : memref<8x32xf32, #tpu.memory_space<vmem>>, vector<8x32xf32>
      tpu.vector_store %arg12[%c0_48, %c0_49], %56 {strides = array<i32>} : memref<8x32xf32, #tpu.memory_space<vmem>>, vector<8x32xf32>,
    } else {
    }
    %c0 = arith.constant 0 : index
    %c0_4 = arith.constant 0 : index
    %c0_5 = arith.constant 0 : index
    %8 = vector.load %arg4[%c0, %c0_4, %c0_5] : memref<1x8x16xf32, #tpu.memory_space<vmem>>, vector<1x8x16xf32>
    %9 = vector.shape_cast %8 : vector<1x8x16xf32> to vector<8x16xf32>
    %c0_6 = arith.constant 0 : index
    %c0_7 = arith.constant 0 : index
    %10 = vector.load %arg5[%c0_6, %c0_7] : memref<16x32xf32, #tpu.memory_space<vmem>>, vector<16x32xf32>
    %cst = arith.constant dense<0.000000e+00> : vector<8x32xf32>
    %11 = tpu.matmul %9, %10, %cst {dimension_numbers = #tpu.dot_dimension_numbers<[1], [0], [0], [1], [0, 0, 1, 1], [], []>} : vector<8x16xf32>, vector<16x32xf32>, vector<8x32xf32> -> vector<8x32xf32>
    %c0_8 = arith.constant 0 : index
    %c0_9 = arith.constant 0 : index
    %12 = vector.load %arg6[%c0_8, %c0_9] : memref<1x32xf32, #tpu.memory_space<vmem>>, vector<1x32xf32>
    %13 = vector.broadcast %12 : vector<1x32xf32> to vector<8x32xf32>
    %14 = arith.addf %11, %13 : vector<8x32xf32>
    %c0_10 = arith.constant 0 : index
    %c0_11 = arith.constant 0 : index
    %15 = vector.load %arg9[%c0_10, %c0_11] : memref<8x32xf32, #tpu.memory_space<vmem>>, vector<8x32xf32>
    %cst_12 = arith.constant 0.176776692 : f32
    %16 = vector.broadcast %cst_12 : f32 to vector<8x32xf32>
    %17 = arith.mulf %15, %16 : vector<8x32xf32>
    %cst_13 = arith.constant dense<0.000000e+00> : vector<8x8xf32>
    %18 = tpu.matmul %17, %14, %cst_13 {dimension_numbers = #tpu.dot_dimension_numbers<[1], [1], [0], [0], [0, 0, 1, 0], [], []>} : vector<8x32xf32>, vector<8x32xf32>, vector<8x8xf32> -> vector<8x8xf32>
    %c0_14 = arith.constant 0 : index
    %c0_15 = arith.constant 0 : index
    %19 = vector.load %arg10[%c0_14, %c0_15] : memref<8x1xf32, #tpu.memory_space<vmem>>, vector<8x1xf32>
    %cst_16 = arith.constant dense<0xFF800000> : vector<8xf32>
    %20 = vector.multi_reduction <maximumf>, %18, %cst_16 [1] : vector<8x8xf32> to vector<8xf32>
    %21 = vector.shape_cast %20 : vector<8xf32> to vector<8x1xf32>
    %22 = arith.maximumf %19, %21 : vector<8x1xf32>
    %23 = arith.subf %19, %22 : vector<8x1xf32>
    %24 = math.exp %23 : vector<8x1xf32>
    %25 = vector.broadcast %22 : vector<8x1xf32> to vector<8x8xf32>
    %26 = arith.subf %18, %25 : vector<8x8xf32>
    %27 = math.exp %26 : vector<8x8xf32>
    %c0_17 = arith.constant 0 : index
    %c0_18 = arith.constant 0 : index
    %28 = vector.load %arg11[%c0_17, %c0_18] : memref<8x1xf32, #tpu.memory_space<vmem>>, vector<8x1xf32>
    %29 = arith.mulf %24, %28 : vector<8x1xf32>
    %cst_19 = arith.constant dense<0.000000e+00> : vector<8xf32>
    %30 = vector.multi_reduction <add>, %27, %cst_19 [1] : vector<8x8xf32> to vector<8xf32>
    %31 = vector.shape_cast %30 : vector<8xf32> to vector<8x1xf32>
    %32 = arith.addf %29, %31 : vector<8x1xf32>
    %c0_20 = arith.constant 0 : index
    %c0_21 = arith.constant 0 : index
    %33 = vector.load %arg11[%c0_20, %c0_21] : memref<8x1xf32, #tpu.memory_space<vmem>>, vector<8x1xf32>
    tpu.vector_store %arg11[%c0_20, %c0_21], %32 {strides = array<i32>} : memref<8x1xf32, #tpu.memory_space<vmem>>, vector<8x1xf32>,
    %c0_22 = arith.constant 0 : index
    %c0_23 = arith.constant 0 : index
    %34 = vector.load %arg12[%c0_22, %c0_23] : memref<8x32xf32, #tpu.memory_space<vmem>>, vector<8x32xf32>
    %35 = vector.broadcast %24 : vector<8x1xf32> to vector<8x32xf32>
    %36 = arith.mulf %35, %34 : vector<8x32xf32>
    %cst_24 = arith.constant dense<0.000000e+00> : vector<8x32xf32>
    %37 = tpu.matmul %27, %14, %cst_24 {dimension_numbers = #tpu.dot_dimension_numbers<[1], [0], [0], [1], [0, 0, 1, 1], [], []>} : vector<8x8xf32>, vector<8x32xf32>, vector<8x32xf32> -> vector<8x32xf32>
    %38 = arith.addf %36, %37 : vector<8x32xf32>
    %c0_25 = arith.constant 0 : index
    %c0_26 = arith.constant 0 : index
    %39 = vector.load %arg12[%c0_25, %c0_26] : memref<8x32xf32, #tpu.memory_space<vmem>>, vector<8x32xf32>
    tpu.vector_store %arg12[%c0_25, %c0_26], %38 {strides = array<i32>} : memref<8x32xf32, #tpu.memory_space<vmem>>, vector<8x32xf32>,
    %c0_27 = arith.constant 0 : index
    %c0_28 = arith.constant 0 : index
    %40 = vector.load %arg10[%c0_27, %c0_28] : memref<8x1xf32, #tpu.memory_space<vmem>>, vector<8x1xf32>
    tpu.vector_store %arg10[%c0_27, %c0_28], %22 {strides = array<i32>} : memref<8x1xf32, #tpu.memory_space<vmem>>, vector<8x1xf32>,
    %c0_i32_29 = arith.constant 0 : i32
    %41 = arith.cmpi eq, %arg2, %c0_i32_29 : i32
    %42 = arith.extui %41 : i1 to i32
    %c0_i32_30 = arith.constant 0 : i32
    %43 = arith.cmpi ne, %42, %c0_i32_30 : i32
    scf.if %43 {
      %c0_31 = arith.constant 0 : index
      %c0_32 = arith.constant 0 : index
      %44 = vector.load %arg12[%c0_31, %c0_32] : memref<8x32xf32, #tpu.memory_space<vmem>>, vector<8x32xf32>
      %c0_33 = arith.constant 0 : index
      %c0_34 = arith.constant 0 : index
      %45 = vector.load %arg11[%c0_33, %c0_34] : memref<8x1xf32, #tpu.memory_space<vmem>>, vector<8x1xf32>
      %46 = tpu.reciprocal %45 : vector<8x1xf32> -> vector<8x1xf32>
      %47 = vector.broadcast %46 : vector<8x1xf32> to vector<8x32xf32>
      %48 = arith.mulf %44, %47 : vector<8x32xf32>
      %cst_35 = arith.constant dense<0.000000e+00> : vector<32xf32>
      %49 = vector.multi_reduction <add>, %48, %cst_35 [0] : vector<8x32xf32> to vector<32xf32>
      %50 = vector.shape_cast %49 : vector<32xf32> to vector<1x32xf32>
      %cst_36 = arith.constant 1.250000e-01 : f32
      %51 = vector.broadcast %cst_36 : f32 to vector<1x32xf32>
      %52 = arith.mulf %50, %51 : vector<1x32xf32>
      %c0_37 = arith.constant 0 : index
      %c0_38 = arith.constant 0 : index
      %53 = vector.load %arg7[%c0_37, %c0_38] : memref<32x128xf32, #tpu.memory_space<vmem>>, vector<32x128xf32>
      %cst_39 = arith.constant dense<0.000000e+00> : vector<1x128xf32>
      %54 = tpu.matmul %52, %53, %cst_39 {dimension_numbers = #tpu.dot_dimension_numbers<[1], [0], [0], [1], [0, 0, 1, 1], [], []>} : vector<1x32xf32>, vector<32x128xf32>, vector<1x128xf32> -> vector<1x128xf32>
      %c0_40 = arith.constant 0 : index
      %c0_41 = arith.constant 0 : index
      %c0_42 = arith.constant 0 : index
      %55 = vector.load %arg8[%c0_40, %c0_41, %c0_42] : memref<1x1x128xf32, #tpu.memory_space<vmem>>, vector<1x1x128xf32>
      %56 = vector.shape_cast %54 : vector<1x128xf32> to vector<1x1x128xf32>
      %57 = arith.addf %55, %56 : vector<1x1x128xf32>
      %c0_43 = arith.constant 0 : index
      %c0_44 = arith.constant 0 : index
      %c0_45 = arith.constant 0 : index
      %58 = vector.load %arg8[%c0_43, %c0_44, %c0_45] : memref<1x1x128xf32, #tpu.memory_space<vmem>>, vector<1x1x128xf32>
      tpu.vector_store %arg8[%c0_43, %c0_44, %c0_45], %57 {strides = array<i32>} : memref<1x1x128xf32, #tpu.memory_space<vmem>>, vector<1x1x128xf32>,
    } else {
    }
    return
  }
  func.func @transform_0(%arg0: i32, %arg1: i32, %arg2: i32) -> (i32, i32, i32) {
    %c0_i32 = arith.constant 0 : i32
    %c0_i32_0 = arith.constant 0 : i32
    return %arg0, %arg1, %c0_i32 : i32, i32, i32
  }
  func.func @transform_1(%arg0: i32, %arg1: i32, %arg2: i32) -> (i32, i32, i32) {
    %c0_i32 = arith.constant 0 : i32
    %c0_i32_0 = arith.constant 0 : i32
    return %arg0, %arg2, %c0_i32 : i32, i32, i32
  }
  func.func @transform_2(%arg0: i32, %arg1: i32, %arg2: i32) -> (i32, i32) {
    %c0_i32 = arith.constant 0 : i32
    %c0_i32_0 = arith.constant 0 : i32
    %c0_i32_1 = arith.constant 0 : i32
    return %c0_i32, %c0_i32_0 : i32, i32
  }
  func.func @transform_3(%arg0: i32, %arg1: i32, %arg2: i32) -> (i32, i32) {
    %c0_i32 = arith.constant 0 : i32
    %c0_i32_0 = arith.constant 0 : i32
    %c0_i32_1 = arith.constant 0 : i32
    return %c0_i32, %c0_i32_0 : i32, i32
  }
  func.func @transform_4(%arg0: i32, %arg1: i32, %arg2: i32) -> (i32, i32) {
    %c0_i32 = arith.constant 0 : i32
    %c0_i32_0 = arith.constant 0 : i32
    %c0_i32_1 = arith.constant 0 : i32
    return %c0_i32, %c0_i32_0 : i32, i32
  }
  func.func @transform_5(%arg0: i32, %arg1: i32, %arg2: i32) -> (i32, i32, i32) {
    %c0_i32 = arith.constant 0 : i32
    %c0_i32_0 = arith.constant 0 : i32
    %c0_i32_1 = arith.constant 0 : i32
    return %arg0, %c0_i32, %c0_i32_0 : i32, i32, i32
  }
}

</mosaic_0001>

<llo_original>
// kernel: tpu_custom_call.1
$region0: #{tpu_custom_call.1}
  #allocation0 [shape = 'u32[]', space=smem, size = 0x4, offset = 0x4, fixed_abs, tag = 'smem constant byte address 0x4 - core index']
  #allocation1 [shape = 'u32[144,128]{1,0:T(1,128)}', space=vmem, size = 0x12000, scoped, tag = 'internal scratch']
  #allocation2 [shape = 'f32[8,32]{1,0:T(8,128)}', space=vmem, size = 0x1000, scoped, tag = 'scratch operand']
  #allocation3 [shape = 'f32[8,1]{1,0:T(8,128)}', space=vmem, size = 0x1000, scoped, tag = 'scratch operand']
  #allocation4 [shape = 'f32[8,1]{1,0:T(8,128)}', space=vmem, size = 0x1000, scoped, tag = 'scratch operand']
  #allocation5 [shape = 'f32[8,32]{1,0:T(8,128)}', space=vmem, size = 0x1000, scoped, tag = 'scratch operand']
  %s0 = inlined_call_operand.hbm [shape: f32[2,8,16], index: 0, kind: input, shape index: {}]
  %s1 = inlined_call_operand.hbm [shape: f32[2,8,16], index: 1, kind: input, shape index: {}]
  %s2 = inlined_call_operand.hbm [shape: f32[16,32], index: 2, kind: input, shape index: {}]
  %s3 = inlined_call_operand.vmem [shape: f32[1,32], index: 3, kind: input, shape index: {}]
  %s4 = inlined_call_operand.hbm [shape: f32[32,128], index: 4, kind: input, shape index: {}]
  %s5 = inlined_call_operand.hbm [shape: f32[2,1,128], index: 5, kind: output, shape index: {}]
  %s6 = sld [smem:[#allocation0]]
  $region81: #{tpu_custom_call.1} parent=0
    _
  %s8 = ssub.s32 1, %s6
  %s9 = scalar_select 0, %s8, %s6
  $region1: #{tpu_custom_call.1} parent=0
    #allocation6 [shape = 'u8[8192]{0}', space=vmem, size = 0x2000, scoped, tag = 'input window, operand 0']
    #allocation7 [shape = 's32[2]{0}', space=sflag, size = 0x8, scoped, tag = 'scoped memory for tpu_custom_call.1']
    #allocation8 [shape = 's32[2]{0}', space=sflag, size = 0x8, scoped, tag = 'scoped memory for tpu_custom_call.1']
    #allocation9 [shape = 'u8[8192]{0}', space=vmem, size = 0x2000, scoped, tag = 'input window, operand 1']
    #allocation10 [shape = 's32[2]{0}', space=sflag, size = 0x8, scoped, tag = 'scoped memory for tpu_custom_call.1']
    #allocation11 [shape = 'u8[8192]{0}', space=vmem, size = 0x2000, scoped, tag = 'input window, operand 2, single buffered']
    #allocation12 [shape = 'u8[16384]{0}', space=vmem, size = 0x4000, scoped, tag = 'input window, operand 4, single buffered']
    #allocation13 [shape = 's32[1]{0}', space=sflag, size = 0x4, scoped, tag = 'scoped memory for tpu_custom_call.1']
    #allocation14 [shape = 'u8[1024]{0}', space=vmem, size = 0x400, scoped, tag = 'output window, operand 0']
    %10 = vsyncpa [#allocation7], 0
    %s11 = scalar_lea.sflag [#allocation7], 1
    %12 = vsyncpa %s11, 0
    %13 = vsyncpa [#allocation10], 0
    %s14 = scalar_lea.sflag [#allocation10], 1
    %15 = vsyncpa %s14, 0
    %16 = vsyncpa [#allocation13], 0
    %17 = vsyncpa [#allocation8], 0
    %s18 = scalar_lea.sflag [#allocation8], 1
    %19 = vsyncpa %s18, 0
    loop: start=0, step=1, limit=4
    $region2: #{tpu_custom_call.1} parent=1 // loop_pre_header
      _
    $region3: #{tpu_custom_call.1} parent=1 // loop_header
      %s21 = sphi 0, %s25
      %p22 = scmp.ge.s32.totalorder %s21, 4
      %s28 = sphi 0, %s47
      %s29 = sphi 0, %s43
      %s30 = sphi 0, %s39
      %s31 = sphi 0, %s28
      %s32 = sphi 0, %s29
      %s33 = sphi 0, %s30
      %s34 = sphi 0, %s31
      %s35 = sphi 0, %s32
      %s36 = sphi 0, %s33
      %s52 = sphi 0, %s54
      %s55 = sphi 0, %s52
      %s56 = sphi 0, %s55
      %s72 = sphi 0, %s56
      %s80 = sphi 0, %s82
      %s83 = sphi 0, %s80
      %s84 = sphi 0, %s83
      %s100 = sphi 0, %s84
      %s104 = sphi 0, %s104
      %s106 = sphi 0, %s104
      %s107 = sphi 0, %s106
      %s121 = sphi 0, %s107
      %s125 = sphi 0, %s125
      %s127 = sphi 0, %s125
      %s128 = sphi 0, %s127
      %s142 = sphi 0, %s128
      %s146 = sphi 0, %s146
      %s148 = sphi 0, %s146
      %s149 = sphi 0, %s148
      %s163 = sphi 0, %s149
      %s169 = sphi 0, %s171
      %s172 = sphi 0, %s169
      %s173 = sphi 0, %s172
      %s189 = sphi 0, %s173
    $region4: #{tpu_custom_call.1} parent=1 // loop_header_branch
      %24 = sbr.rel (%p22) target = $region8
    $region5: #{tpu_custom_call.1} parent=1 // loop_body
      %s26 = ssub.s32 %s21, 1
      %s27 = ssub.s32 %s21, 2
      %s37 = sadd.s32 1, %s30
      %p38 = scmp.ge.s32.totalorder %s37, 1
      %s39 = scalar_select %p38, 0, %s37
      %s40 = sadd.s32 1, %s29
      %s41 = scalar_select %p38, %s40, %s29
      %p42 = scmp.ge.s32.totalorder %s41, 1
      %s43 = scalar_select %p42, 0, %s41
      %s44 = sadd.s32 1, %s28
      %s45 = scalar_select %p42, %s44, %s28
      %p46 = scmp.ge.s32.totalorder %s45, 2
      %s47 = scalar_select %p46, 0, %s45
      %s48 = ssub.s32 %s28, %s47
      %s49 = ssub.s32 %s29, %s43
      %s50 = sor.u32 %s48, %s49
      %p51 = scmp.eq.s32.totalorder %s50, 0
      %s53 = sadd.s32 %s52, 1
      %s54 = scalar_select %p51, %s52, %s53
      %p57 = pneg %p51
      %p58 = scmp.eq.s32.totalorder %s21, 1
      %p59 = por %p57, %p58
      %p60 = scmp.ne.s32.totalorder %s52, %s55
      %p61 = scmp.eq.s32.totalorder %s21, 0
      %p62 = por %p60, %p61
      %p63 = scmp.ne.s32.totalorder %s52, %s55
      %p64 = scmp.eq.s32.totalorder %s26, 1
      %p65 = por %p63, %p64
      %p66 = scmp.ne.s32.totalorder %s55, %s56
      %p67 = scmp.eq.s32.totalorder %s26, 0
      %p68 = por %p66, %p67
      %p69 = scmp.ne.s32.totalorder %s55, %s56
      %p70 = scmp.eq.s32.totalorder %s27, 1
      %p71 = por %p69, %p70
      %p73 = scmp.ne.s32.totalorder %s56, %s72
      %p74 = scmp.eq.s32.totalorder %s27, 0
      %p75 = por %p73, %p74
      %s76 = ssub.s32 %s28, %s47
      %s77 = ssub.s32 %s30, %s39
      %s78 = sor.u32 %s76, %s77
      %p79 = scmp.eq.s32.totalorder %s78, 0
      %s81 = sadd.s32 %s80, 1
      %s82 = scalar_select %p79, %s80, %s81
      %p85 = pneg %p79
      %p86 = scmp.eq.s32.totalorder %s21, 1
      %p87 = por %p85, %p86
      %p88 = scmp.ne.s32.totalorder %s80, %s83
      %p89 = scmp.eq.s32.totalorder %s21, 0
      %p90 = por %p88, %p89
      %p91 = scmp.ne.s32.totalorder %s80, %s83
      %p92 = scmp.eq.s32.totalorder %s26, 1
      %p93 = por %p91, %p92
      %p94 = scmp.ne.s32.totalorder %s83, %s84
      %p95 = scmp.eq.s32.totalorder %s26, 0
      %p96 = por %p94, %p95
      %p97 = scmp.ne.s32.totalorder %s83, %s84
      %p98 = scmp.eq.s32.totalorder %s27, 1
      %p99 = por %p97, %p98
      %p101 = scmp.ne.s32.totalorder %s84, %s100
      %p102 = scmp.eq.s32.totalorder %s27, 0
      %p103 = por %p101, %p102
      %s105 = sadd.s32 %s104, 1
      %p108 = scmp.eq.s32.totalorder %s21, 1
      %p109 = scmp.ne.s32.totalorder %s104, %s106
      %p110 = scmp.eq.s32.totalorder %s21, 0
      %p111 = por %p109, %p110
      %p112 = scmp.ne.s32.totalorder %s104, %s106
      %p113 = scmp.eq.s32.totalorder %s26, 1
      %p114 = por %p112, %p113
      %p115 = scmp.ne.s32.totalorder %s106, %s107
      %p116 = scmp.eq.s32.totalorder %s26, 0
      %p117 = por %p115, %p116
      %p118 = scmp.ne.s32.totalorder %s106, %s107
      %p119 = scmp.eq.s32.totalorder %s27, 1
      %p120 = por %p118, %p119
      %p122 = scmp.ne.s32.totalorder %s107, %s121
      %p123 = scmp.eq.s32.totalorder %s27, 0
      %p124 = por %p122, %p123
      %s126 = sadd.s32 %s125, 1
      %p129 = scmp.eq.s32.totalorder %s21, 1
      %p130 = scmp.ne.s32.totalorder %s125, %s127
      %p131 = scmp.eq.s32.totalorder %s21, 0
      %p132 = por %p130, %p131
      %p133 = scmp.ne.s32.totalorder %s125, %s127
      %p134 = scmp.eq.s32.totalorder %s26, 1
      %p135 = por %p133, %p134
      %p136 = scmp.ne.s32.totalorder %s127, %s128
      %p137 = scmp.eq.s32.totalorder %s26, 0
      %p138 = por %p136, %p137
      %p139 = scmp.ne.s32.totalorder %s127, %s128
      %p140 = scmp.eq.s32.totalorder %s27, 1
      %p141 = por %p139, %p140
      %p143 = scmp.ne.s32.totalorder %s128, %s142
      %p144 = scmp.eq.s32.totalorder %s27, 0
      %p145 = por %p143, %p144
      %s147 = sadd.s32 %s146, 1
      %p150 = scmp.eq.s32.totalorder %s21, 1
      %p151 = scmp.ne.s32.totalorder %s146, %s148
      %p152 = scmp.eq.s32.totalorder %s21, 0
      %p153 = por %p151, %p152
      %p154 = scmp.ne.s32.totalorder %s146, %s148
      %p155 = scmp.eq.s32.totalorder %s26, 1
      %p156 = por %p154, %p155
      %p157 = scmp.ne.s32.totalorder %s148, %s149
      %p158 = scmp.eq.s32.totalorder %s26, 0
      %p159 = por %p157, %p158
      %p160 = scmp.ne.s32.totalorder %s148, %s149
      %p161 = scmp.eq.s32.totalorder %s27, 1
      %p162 = por %p160, %p161
      %p164 = scmp.ne.s32.totalorder %s149, %s163
      %p165 = scmp.eq.s32.totalorder %s27, 0
      %p166 = por %p164, %p165
      %s167 = ssub.s32 %s28, %s47
      %p168 = scmp.eq.s32.totalorder %s167, 0
      %s170 = sadd.s32 %s169, 1
      %s171 = scalar_select %p168, %s169, %s170
      %p174 = pneg %p168
      %p175 = scmp.eq.s32.totalorder %s21, 1
      %p176 = por %p174, %p175
      %p177 = scmp.ne.s32.totalorder %s169, %s172
      %p178 = scmp.eq.s32.totalorder %s21, 0
      %p179 = por %p177, %p178
      %p180 = scmp.ne.s32.totalorder %s169, %s172
      %p181 = scmp.eq.s32.totalorder %s26, 1
      %p182 = por %p180, %p181
      %p183 = scmp.ne.s32.totalorder %s172, %s173
      %p184 = scmp.eq.s32.totalorder %s26, 0
      %p185 = por %p183, %p184
      %p186 = scmp.ne.s32.totalorder %s172, %s173
      %p187 = scmp.eq.s32.totalorder %s27, 1
      %p188 = por %p186, %p187
      %p190 = scmp.ne.s32.totalorder %s173, %s189
      %p191 = scmp.eq.s32.totalorder %s27, 0
      %p192 = por %p190, %p191
      %p193 = scmp.le.s32.totalorder 1, %s21
      %p194 = scmp.lt.s32.totalorder %s21, 3
      %p195 = pnand %p193, %p194
      %p196 = pneg %p195
      // Predicated region
      $region9: #{tpu_custom_call.1} parent=5 // pred_check
        _
      $region10: #{tpu_custom_call.1} parent=5 // pred_check_branch
        %198 = sbr.rel (%p195) target = $region12
      $region11: #{tpu_custom_call.1} parent=5 // pred_region
        %s199 = ssub.s32 %s21, 1
        // Predicated region
        $region13: #{tpu_custom_call.1} parent=11 // pred_check
          %p200 = pneg %p117
        $region14: #{tpu_custom_call.1} parent=11 // pred_check_branch
          %202 = sbr.rel (%p200) target = $region16
        $region15: #{tpu_custom_call.1} parent=11 // pred_region
          %s204 = ssub.s32 256, 256
          %205 = vsyncadd [#allocation10], %s204
          %s206 = sshll.u32 [#allocation11], 4
          %s207 = int_to_ptr.vmem [resolvable:$true] %s206
          %212 = dma.hbm_to_vmem [thread:$0]  %s2, 256, %s207, [#allocation10], 128, 128, 8
        $region16: #{tpu_custom_call.1} parent=11 // pred_fallthru
          _
        // Predicated region
        $region17: #{tpu_custom_call.1} parent=11 // pred_check
          %p213 = pneg %p138
        $region18: #{tpu_custom_call.1} parent=11 // pred_check_branch
          %215 = sbr.rel (%p213) target = $region20
        $region19: #{tpu_custom_call.1} parent=11 // pred_region
          _
        $region20: #{tpu_custom_call.1} parent=11 // pred_fallthru
          _
        // Predicated region
        $region21: #{tpu_custom_call.1} parent=11 // pred_check
          %p216 = pneg %p159
        $region22: #{tpu_custom_call.1} parent=11 // pred_check_branch
          %218 = sbr.rel (%p216) target = $region24
        $region23: #{tpu_custom_call.1} parent=11 // pred_region
          %s220 = ssub.s32 512, 512
          %221 = vsyncadd [#allocation13], %s220
          %s222 = sshll.u32 [#allocation12], 4
          %s223 = int_to_ptr.vmem [resolvable:$true] %s222
          %228 = dma.hbm_to_vmem [thread:$0]  %s4, 512, %s223, [#allocation13], 128, 128, 8
        $region24: #{tpu_custom_call.1} parent=11 // pred_fallthru
          _
      $region12: #{tpu_custom_call.1} parent=5 // pred_fallthru
        _
      %p229 = scmp.lt.s32.totalorder %s21, 2
      // Predicated region
      $region25: #{tpu_custom_call.1} parent=5 // pred_check
        %p230 = pneg %p229
      $region26: #{tpu_custom_call.1} parent=5 // pred_check_branch
        %232 = sbr.rel (%p230) target = $region28
      $region27: #{tpu_custom_call.1} parent=5 // pred_region
        // Predicated region
        $region29: #{tpu_custom_call.1} parent=27 // pred_check
          %p233 = pneg %p62
        $region30: #{tpu_custom_call.1} parent=27 // pred_check_branch
          %235 = sbr.rel (%p233) target = $region32
        $region31: #{tpu_custom_call.1} parent=27 // pred_region
          %s236 = sand.u32 %s52, 1
          %s237 = scalar_lea.sflag [#allocation7], %s236
          %s238 = sand.u32 %s52, 1
          %s239 = smul.addr %s238, 8
          %s240 = scalar_lea.vmem [#allocation6], %s239
          %s242 = ssub.s32 128, 128
          %243 = vsyncadd %s237, %s242
          %s244 = sadd.s32 %s29, %s28
          %s245 = smul.addr %s244, 128
          %s246 = scalar_lea.hbm %s0, %s245
          %s248 = sshll.u32 %s240, 4
          %s249 = int_to_ptr.vmem [resolvable:$true] %s248
          %251 = dma.hbm_to_vmem [thread:$0]  %s246, 128, %s249, %s237
        $region32: #{tpu_custom_call.1} parent=27 // pred_fallthru
          _
        // Predicated region
        $region33: #{tpu_custom_call.1} parent=27 // pred_check
          %p252 = pneg %p90
        $region34: #{tpu_custom_call.1} parent=27 // pred_check_branch
          %254 = sbr.rel (%p252) target = $region36
        $region35: #{tpu_custom_call.1} parent=27 // pred_region
          %s255 = sand.u32 %s21, 1
          %s256 = scalar_lea.sflag [#allocation10], %s255
          %s257 = sand.u32 %s80, 1
          %s258 = smul.addr %s257, 8
          %s259 = scalar_lea.vmem [#allocation9], %s258
          %s261 = ssub.s32 128, 128
          %262 = vsyncadd %s256, %s261
          %s263 = sadd.s32 %s30, %s28
          %s264 = smul.addr %s263, 128
          %s265 = scalar_lea.hbm %s1, %s264
          %s267 = sshll.u32 %s259, 4
          %s268 = int_to_ptr.vmem [resolvable:$true] %s267
          %270 = dma.hbm_to_vmem [thread:$0]  %s265, 128, %s268, %s256
        $region36: #{tpu_custom_call.1} parent=27 // pred_fallthru
          _
      $region28: #{tpu_custom_call.1} parent=5 // pred_fallthru
        _
      %p271 = scmp.le.s32.totalorder 1, %s21
      %p272 = scmp.lt.s32.totalorder %s21, 3
      %p273 = pnand %p271, %p272
      %p274 = pneg %p273
      // Predicated region
      $region37: #{tpu_custom_call.1} parent=5 // pred_check
        _
      $region38: #{tpu_custom_call.1} parent=5 // pred_check_branch
        %276 = sbr.rel (%p273) target = $region40
      $region39: #{tpu_custom_call.1} parent=5 // pred_region
        %s277 = ssub.s32 %s21, 1
        %s278 = sand.u32 %s55, 1
        %s279 = scalar_lea.sflag [#allocation7], %s278
        %s280 = sand.u32 %s55, 1
        %s281 = smul.addr %s280, 8
        %s282 = scalar_lea.vmem [#allocation6], %s281
        // Predicated region
        $region41: #{tpu_custom_call.1} parent=39 // pred_check
          %p283 = pneg %p68
        $region42: #{tpu_custom_call.1} parent=39 // pred_check_branch
          %285 = sbr.rel (%p283) target = $region44
        $region43: #{tpu_custom_call.1} parent=39 // pred_region
          %286 = dma.done %s279, 128
        $region44: #{tpu_custom_call.1} parent=39 // pred_fallthru
          _
        %s287 = sand.u32 %s26, 1
        %s288 = scalar_lea.sflag [#allocation10], %s287
        %s289 = sand.u32 %s83, 1
        %s290 = smul.addr %s289, 8
        %s291 = scalar_lea.vmem [#allocation9], %s290
        // Predicated region
        $region45: #{tpu_custom_call.1} parent=39 // pred_check
          %p292 = pneg %p96
        $region46: #{tpu_custom_call.1} parent=39 // pred_check_branch
          %294 = sbr.rel (%p292) target = $region48
        $region47: #{tpu_custom_call.1} parent=39 // pred_region
          %295 = dma.done %s288, 128
        $region48: #{tpu_custom_call.1} parent=39 // pred_fallthru
          _
        // Predicated region
        $region49: #{tpu_custom_call.1} parent=39 // pred_check
          %p296 = pneg %p117
        $region50: #{tpu_custom_call.1} parent=39 // pred_check_branch
          %298 = sbr.rel (%p296) target = $region52
        $region51: #{tpu_custom_call.1} parent=39 // pred_region
          %299 = dma.done [#allocation10], 256
        $region52: #{tpu_custom_call.1} parent=39 // pred_fallthru
          _
        // Predicated region
        $region53: #{tpu_custom_call.1} parent=39 // pred_check
          %p300 = pneg %p159
        $region54: #{tpu_custom_call.1} parent=39 // pred_check_branch
          %302 = sbr.rel (%p300) target = $region56
        $region55: #{tpu_custom_call.1} parent=39 // pred_region
          %303 = dma.done [#allocation13], 512
        $region56: #{tpu_custom_call.1} parent=39 // pred_fallthru
          _
        %s304 = sand.u32 %s55, 1
        %s305 = scalar_lea.sflag [#allocation7], %s304
        %s306 = sand.u32 %s55, 1
        %s307 = smul.addr %s306, 8
        %s308 = scalar_lea.vmem [#allocation6], %s307
        %p309 = pneg %p68
        %p310 = pneg %p65
        %s311 = sand.u32 %s26, 1
        %s312 = scalar_lea.sflag [#allocation10], %s311
        %s313 = sand.u32 %s83, 1
        %s314 = smul.addr %s313, 8
        %s315 = scalar_lea.vmem [#allocation9], %s314
        %p316 = pneg %p96
        %p317 = pneg %p93
        %p318 = pneg %p117
        %p319 = pneg %p114
        %p320 = pneg %p138
        %p321 = pneg %p135
        %p322 = pneg %p159
        %p323 = pneg %p156
        %p324 = pneg %p185
        %p325 = pneg %p182
        %s326 = sand.u32 %s172, 1
        %s327 = scalar_lea.sflag [#allocation8], %s326
        %s328 = sand.u32 %s172, 1
        %s329 = scalar_lea.vmem [#allocation14], %s328
        %p330 = scmp.eq.s32.totalorder %s32, 0
        %p331 = scmp.eq.s32.totalorder %s33, 0
        %p332 = pnand %p330, %p331
        %p333 = pneg %p332
        // Predicated region
        $region57: #{tpu_custom_call.1} parent=39 // pred_check
          _
        $region58: #{tpu_custom_call.1} parent=39 // pred_check_branch
          %335 = sbr.rel (%p332) target = $region60
        $region59: #{tpu_custom_call.1} parent=39 // pred_region
          %336 = vst [vmem:[%s329] sm:$0x1] 0.0
        $region60: #{tpu_custom_call.1} parent=39 // pred_fallthru
          _
        // Predicated region
        $region61: #{tpu_custom_call.1} parent=39 // pred_check
          %p337 = pneg %p331
        $region62: #{tpu_custom_call.1} parent=39 // pred_check_branch
          %339 = sbr.rel (%p337) target = $region64
        $region63: #{tpu_custom_call.1} parent=39 // pred_region
          %v340 = vld [vmem:[%s282] sm:$0xff]
          %v341 = vld [vmem:[#allocation11] sm:$0xff]
          %v342 = vld [vmem:[#allocation11 + $0x8] sm:$0xff]
          %v343 = vld [vmem:[%s3] sm:$0x1]
          %v345 = vlaneseq
          %v346 = vshrl.u32 %v345, 7
          %v347 = vsub.s32 0, %v346
          %v348 = vrot.slane %v343, %v347
          %vm350 = vcmask 130048
          %v352 = vsel %vm350, %v340, 0
          %354 = vmatprep.subr.mxu0 0.0
          %355 = vmatpush1.msra.mxu0 0.0
          %356 = vmatprep.subr.mxu0 0.0
          %357 = vmatpush1.msra.mxu0 0.0
          %358 = vmatprep.subr.mxu0 0.0
          %359 = vmatpush1.msra.mxu0 0.0
          %360 = vmatprep.subr.mxu0 0.0
          %361 = vmatpush1.msra.mxu0 0.0
          %362 = vmatprep.subr.mxu0 0.0
          %363 = vmatpush1.msra.mxu0 0.0
          %364 = vmatprep.subr.mxu0 0.0
          %365 = vmatpush1.msra.mxu0 0.0
          %366 = vmatprep.subr.mxu0 0.0
          %367 = vmatpush1.msra.mxu0 0.0
          %368 = vmatprep.subr.mxu0 0.0
          %369 = vmatpush1.msra.mxu0 0.0
          %370 = vmatprep.subr.mxu0 0.0
          %371 = vmatpush1.msra.mxu0 0.0
          %372 = vmatprep.subr.mxu0 0.0
          %373 = vmatpush1.msra.mxu0 0.0
          %374 = vmatprep.subr.mxu0 0.0
          %375 = vmatpush1.msra.mxu0 0.0
          %376 = vmatprep.subr.mxu0 0.0
          %377 = vmatpush1.msra.mxu0 0.0
          %378 = vmatprep.subr.mxu0 0.0
          %379 = vmatpush1.msra.mxu0 0.0
          %380 = vmatprep.subr.mxu0 0.0
          %381 = vmatpush1.msra.mxu0 0.0
          %382 = vmatprep.subr.mxu0 0.0
          %383 = vmatpush1.msra.mxu0 %v342
          %384 = vmatprep.subr.mxu0 0.0
          %385 = vmatpush1.msra.mxu0 %v341
          %386 = vmatprep.subr.mxu0 0.0
          %387 = vmatpush2.msra.mxu0 0.0
          %388 = vmatprep.subr.mxu0 0.0
          %389 = vmatpush2.msra.mxu0 0.0
          %390 = vmatprep.subr.mxu0 0.0
          %391 = vmatpush2.msra.mxu0 0.0
          %392 = vmatprep.subr.mxu0 0.0
          %393 = vmatpush2.msra.mxu0 0.0
          %394 = vmatprep.subr.mxu0 0.0
          %395 = vmatpush2.msra.mxu0 0.0
          %396 = vmatprep.subr.mxu0 0.0
          %397 = vmatpush2.msra.mxu0 0.0
          %398 = vmatprep.subr.mxu0 0.0
          %399 = vmatpush2.msra.mxu0 0.0
          %400 = vmatprep.subr.mxu0 0.0
          %401 = vmatpush2.msra.mxu0 0.0
          %402 = vmatprep.subr.mxu0 0.0
          %403 = vmatpush2.msra.mxu0 0.0
          %404 = vmatprep.subr.mxu0 0.0
          %405 = vmatpush2.msra.mxu0 0.0
          %406 = vmatprep.subr.mxu0 0.0
          %407 = vmatpush2.msra.mxu0 0.0
          %408 = vmatprep.subr.mxu0 0.0
          %409 = vmatpush2.msra.mxu0 0.0
          %410 = vmatprep.subr.mxu0 0.0
          %411 = vmatpush2.msra.mxu0 0.0
          %412 = vmatprep.subr.mxu0 0.0
          %413 = vmatpush2.msra.mxu0 0.0
          %414 = vmatprep.subr.mxu0 0.0
          %415 = vmatpush2.msra.mxu0 0.0
          %416 = vmatprep.subr.mxu0 0.0
          %417 = vmatpush2.msra.mxu0 0.0
          %418 = vmatprep.mubr.f32.mxu0 0.0
          %419 = vmatmul.mubr.f32.gmra.mxu0 %v352
          %v420 = vpop.f32.mrf.mxu0
          %v421 = vadd.f32 %v348, %v420
          %v422 = vpop.f32.mrf.mxu0
          %423 = vdwg.mxu0
          %vm424 = vcmask 261120
          %425 = vst.msk [vmem:[#allocation2] sm:$0xff] %vm424, %v421
          %vm426 = vcmask 7168
          %427 = vst.msk [vmem:[#allocation3] sm:$0xff] %vm426, -inf
          %428 = vst.msk [vmem:[#allocation4] sm:$0xff] %vm426, 0.0
          %429 = vst.msk [vmem:[#allocation5] sm:$0xff] %vm424, 0.0
        $region64: #{tpu_custom_call.1} parent=39 // pred_fallthru
          _
        %v430 = vld [vmem:[%s291] sm:$0xff]
        %v431 = vld [vmem:[#allocation11] sm:$0xff]
        %v432 = vld [vmem:[#allocation11 + $0x8] sm:$0xff]
        %v433 = vld [vmem:[%s3] sm:$0x1]
        %v435 = vlaneseq
        %v436 = vshrl.u32 %v435, 7
        %v437 = vsub.s32 0, %v436
        %v438 = vrot.slane %v433, %v437
        %vm440 = vcmask 130048
        %v442 = vsel %vm440, %v430, 0
        %444 = vmatprep.subr.mxu0 0.0
        %445 = vmatpush1.msra.mxu0 0.0
        %446 = vmatprep.subr.mxu0 0.0
        %447 = vmatpush1.msra.mxu0 0.0
        %448 = vmatprep.subr.mxu0 0.0
        %449 = vmatpush1.msra.mxu0 0.0
        %450 = vmatprep.subr.mxu0 0.0
        %451 = vmatpush1.msra.mxu0 0.0
        %452 = vmatprep.subr.mxu0 0.0
        %453 = vmatpush1.msra.mxu0 0.0
        %454 = vmatprep.subr.mxu0 0.0
        %455 = vmatpush1.msra.mxu0 0.0
        %456 = vmatprep.subr.mxu0 0.0
        %457 = vmatpush1.msra.mxu0 0.0
        %458 = vmatprep.subr.mxu0 0.0
        %459 = vmatpush1.msra.mxu0 0.0
        %460 = vmatprep.subr.mxu0 0.0
        %461 = vmatpush1.msra.mxu0 0.0
        %462 = vmatprep.subr.mxu0 0.0
        %463 = vmatpush1.msra.mxu0 0.0
        %464 = vmatprep.subr.mxu0 0.0
        %465 = vmatpush1.msra.mxu0 0.0
        %466 = vmatprep.subr.mxu0 0.0
        %467 = vmatpush1.msra.mxu0 0.0
        %468 = vmatprep.subr.mxu0 0.0
        %469 = vmatpush1.msra.mxu0 0.0
        %470 = vmatprep.subr.mxu0 0.0
        %471 = vmatpush1.msra.mxu0 0.0
        %472 = vmatprep.subr.mxu0 0.0
        %473 = vmatpush1.msra.mxu0 %v432
        %474 = vmatprep.subr.mxu0 0.0
        %475 = vmatpush1.msra.mxu0 %v431
        %476 = vmatprep.subr.mxu0 0.0
        %477 = vmatpush2.msra.mxu0 0.0
        %478 = vmatprep.subr.mxu0 0.0
        %479 = vmatpush2.msra.mxu0 0.0
        %480 = vmatprep.subr.mxu0 0.0
        %481 = vmatpush2.msra.mxu0 0.0
        %482 = vmatprep.subr.mxu0 0.0
        %483 = vmatpush2.msra.mxu0 0.0
        %484 = vmatprep.subr.mxu0 0.0
        %485 = vmatpush2.msra.mxu0 0.0
        %486 = vmatprep.subr.mxu0 0.0
        %487 = vmatpush2.msra.mxu0 0.0
        %488 = vmatprep.subr.mxu0 0.0
        %489 = vmatpush2.msra.mxu0 0.0
        %490 = vmatprep.subr.mxu0 0.0
        %491 = vmatpush2.msra.mxu0 0.0
        %492 = vmatprep.subr.mxu0 0.0
        %493 = vmatpush2.msra.mxu0 0.0
        %494 = vmatprep.subr.mxu0 0.0
        %495 = vmatpush2.msra.mxu0 0.0
        %496 = vmatprep.subr.mxu0 0.0
        %497 = vmatpush2.msra.mxu0 0.0
        %498 = vmatprep.subr.mxu0 0.0
        %499 = vmatpush2.msra.mxu0 0.0
        %500 = vmatprep.subr.mxu0 0.0
        %501 = vmatpush2.msra.mxu0 0.0
        %502 = vmatprep.subr.mxu0 0.0
        %503 = vmatpush2.msra.mxu0 0.0
        %504 = vmatprep.subr.mxu0 0.0
        %505 = vmatpush2.msra.mxu0 0.0
        %506 = vmatprep.subr.mxu0 0.0
        %507 = vmatpush2.msra.mxu0 0.0
        %508 = vmatprep.mubr.f32.mxu0 0.0
        %509 = vmatmul.mubr.f32.gmra.mxu0 %v442
        %v510 = vpop.f32.mrf.mxu0
        %v511 = vadd.f32 %v438, %v510
        %v512 = vpop.f32.mrf.mxu0
        %513 = vdwg.mxu0
        %v514 = vld [vmem:[#allocation2] sm:$0xff]
        %v515 = vmul.f32 %v514, 0.17677669
        %vm516 = vcmask 261120
        %v518 = vsel %vm516, %v515, 0
        %v521 = vsel %vm516, %v511, 0
        %523 = vmatprep.subr.mxu0 0.0
        %524 = vmatpush1.xpose.msra.mxu0 0.0
        %525 = vmatprep.subr.mxu0 0.0
        %526 = vmatpush1.xpose.msra.mxu0 0.0
        %527 = vmatprep.subr.mxu0 0.0
        %528 = vmatpush1.xpose.msra.mxu0 0.0
        %529 = vmatprep.subr.mxu0 0.0
        %530 = vmatpush1.xpose.msra.mxu0 0.0
        %531 = vmatprep.subr.mxu0 0.0
        %532 = vmatpush1.xpose.msra.mxu0 0.0
        %533 = vmatprep.subr.mxu0 0.0
        %534 = vmatpush1.xpose.msra.mxu0 0.0
        %535 = vmatprep.subr.mxu0 0.0
        %536 = vmatpush1.xpose.msra.mxu0 0.0
        %537 = vmatprep.subr.mxu0 0.0
        %538 = vmatpush1.xpose.msra.mxu0 0.0
        %539 = vmatprep.subr.mxu0 0.0
        %540 = vmatpush1.xpose.msra.mxu0 0.0
        %541 = vmatprep.subr.mxu0 0.0
        %542 = vmatpush1.xpose.msra.mxu0 0.0
        %543 = vmatprep.subr.mxu0 0.0
        %544 = vmatpush1.xpose.msra.mxu0 0.0
        %545 = vmatprep.subr.mxu0 0.0
        %546 = vmatpush1.xpose.msra.mxu0 0.0
        %547 = vmatprep.subr.mxu0 0.0
        %548 = vmatpush1.xpose.msra.mxu0 0.0
        %549 = vmatprep.subr.mxu0 0.0
        %550 = vmatpush1.xpose.msra.mxu0 0.0
        %551 = vmatprep.subr.mxu0 0.0
        %552 = vmatpush1.xpose.msra.mxu0 0.0
        %553 = vmatprep.subr.mxu0 0.0
        %554 = vmatpush1.xpose.msra.mxu0 %v521
        %555 = vmatprep.subr.mxu0 0.0
        %556 = vmatpush2.xpose.msra.mxu0 0.0
        %557 = vmatprep.subr.mxu0 0.0
        %558 = vmatpush2.xpose.msra.mxu0 0.0
        %559 = vmatprep.subr.mxu0 0.0
        %560 = vmatpush2.xpose.msra.mxu0 0.0
        %561 = vmatprep.subr.mxu0 0.0
        %562 = vmatpush2.xpose.msra.mxu0 0.0
        %563 = vmatprep.subr.mxu0 0.0
        %564 = vmatpush2.xpose.msra.mxu0 0.0
        %565 = vmatprep.subr.mxu0 0.0
        %566 = vmatpush2.xpose.msra.mxu0 0.0
        %567 = vmatprep.subr.mxu0 0.0
        %568 = vmatpush2.xpose.msra.mxu0 0.0
        %569 = vmatprep.subr.mxu0 0.0
        %570 = vmatpush2.xpose.msra.mxu0 0.0
        %571 = vmatprep.subr.mxu0 0.0
        %572 = vmatpush2.xpose.msra.mxu0 0.0
        %573 = vmatprep.subr.mxu0 0.0
        %574 = vmatpush2.xpose.msra.mxu0 0.0
        %575 = vmatprep.subr.mxu0 0.0
        %576 = vmatpush2.xpose.msra.mxu0 0.0
        %577 = vmatprep.subr.mxu0 0.0
        %578 = vmatpush2.xpose.msra.mxu0 0.0
        %579 = vmatprep.subr.mxu0 0.0
        %580 = vmatpush2.xpose.msra.mxu0 0.0
        %581 = vmatprep.subr.mxu0 0.0
        %582 = vmatpush2.xpose.msra.mxu0 0.0
        %583 = vmatprep.subr.mxu0 0.0
        %584 = vmatpush2.xpose.msra.mxu0 0.0
        %585 = vmatprep.subr.mxu0 0.0
        %586 = vmatpush2.xpose.msra.mxu0 0.0
        %587 = vmatprep.mubr.f32.mxu0 0.0
        %588 = vmatmul.mubr.f32.gmra.mxu0 %v518
        %v589 = vpop.f32.mrf.mxu0
        %v590 = vadd.f32 0.0, %v589
        %v591 = vpop.f32.mrf.mxu0
        %592 = vdwg.mxu0
        %v593 = vld [vmem:[#allocation3] sm:$0xff]
        %vm594 = vcmask 64512
        %v595 = vsel %vm594, %v590, -inf
        %596 = vmax.xlane.f32.xlu0 %v595
        %v597 = vpop.xlane.xlu0 %596
        %v598 = vmax.f32 %v593, %v597
        %v599 = vsub.f32 %v593, %v598
        %v600 = vmul.f32 %v599, 1.442695
        %v601 = vpow.pop %v600
        %603 = vset.pattern.permute.xlu0 0
        %604 = vperm.xlu0 %603, %v598
        %v605 = vpop.permute.xlu0 %604
        %v607 = vsub.f32 %v590, %v605
        %v608 = vmul.f32 %v607, 1.442695
        %v609 = vpow.pop %v608
        %v610 = vld [vmem:[#allocation4] sm:$0xff]
        %v611 = vmul.f32 %v601, %v610
        %v612 = vsel %vm594, %v609, 0.0
        %613 = vadd.xlane.f32.xlu0 %v612
        %v614 = vpop.xlane.xlu0 %613
        %v615 = vadd.f32 %v611, %v614
        %vm616 = vcmask 7168
        %617 = vst.msk [vmem:[#allocation4] sm:$0xff] %vm616, %v615
        %v618 = vld [vmem:[#allocation5] sm:$0xff]
        %620 = vset.pattern.permute.xlu0 0
        %621 = vperm.xlu0 %620, %v601
        %v622 = vpop.permute.xlu0 %621
        %v624 = vmul.f32 %v622, %v618
        %v626 = vsel %vm594, %v609, 0
        %628 = vmatprep.subr.mxu0 0.0
        %629 = vmatpush1.msra.mxu0 0.0
        %630 = vmatprep.subr.mxu0 0.0
        %631 = vmatpush1.msra.mxu0 0.0
        %632 = vmatprep.subr.mxu0 0.0
        %633 = vmatpush1.msra.mxu0 0.0
        %634 = vmatprep.subr.mxu0 0.0
        %635 = vmatpush1.msra.mxu0 0.0
        %636 = vmatprep.subr.mxu0 0.0
        %637 = vmatpush1.msra.mxu0 0.0
        %638 = vmatprep.subr.mxu0 0.0
        %639 = vmatpush1.msra.mxu0 0.0
        %640 = vmatprep.subr.mxu0 0.0
        %641 = vmatpush1.msra.mxu0 0.0
        %642 = vmatprep.subr.mxu0 0.0
        %643 = vmatpush1.msra.mxu0 0.0
        %644 = vmatprep.subr.mxu0 0.0
        %645 = vmatpush1.msra.mxu0 0.0
        %646 = vmatprep.subr.mxu0 0.0
        %647 = vmatpush1.msra.mxu0 0.0
        %648 = vmatprep.subr.mxu0 0.0
        %649 = vmatpush1.msra.mxu0 0.0
        %650 = vmatprep.subr.mxu0 0.0
        %651 = vmatpush1.msra.mxu0 0.0
        %652 = vmatprep.subr.mxu0 0.0
        %653 = vmatpush1.msra.mxu0 0.0
        %654 = vmatprep.subr.mxu0 0.0
        %655 = vmatpush1.msra.mxu0 0.0
        %656 = vmatprep.subr.mxu0 0.0
        %657 = vmatpush1.msra.mxu0 0.0
        %658 = vmatprep.subr.mxu0 0.0
        %659 = vmatpush1.msra.mxu0 %v511
        %660 = vmatprep.subr.mxu0 0.0
        %661 = vmatpush2.msra.mxu0 0.0
        %662 = vmatprep.subr.mxu0 0.0
        %663 = vmatpush2.msra.mxu0 0.0
        %664 = vmatprep.subr.mxu0 0.0
        %665 = vmatpush2.msra.mxu0 0.0
        %666 = vmatprep.subr.mxu0 0.0
        %667 = vmatpush2.msra.mxu0 0.0
        %668 = vmatprep.subr.mxu0 0.0
        %669 = vmatpush2.msra.mxu0 0.0
        %670 = vmatprep.subr.mxu0 0.0
        %671 = vmatpush2.msra.mxu0 0.0
        %672 = vmatprep.subr.mxu0 0.0
        %673 = vmatpush2.msra.mxu0 0.0
        %674 = vmatprep.subr.mxu0 0.0
        %675 = vmatpush2.msra.mxu0 0.0
        %676 = vmatprep.subr.mxu0 0.0
        %677 = vmatpush2.msra.mxu0 0.0
        %678 = vmatprep.subr.mxu0 0.0
        %679 = vmatpush2.msra.mxu0 0.0
        %680 = vmatprep.subr.mxu0 0.0
        %681 = vmatpush2.msra.mxu0 0.0
        %682 = vmatprep.subr.mxu0 0.0
        %683 = vmatpush2.msra.mxu0 0.0
        %684 = vmatprep.subr.mxu0 0.0
        %685 = vmatpush2.msra.mxu0 0.0
        %686 = vmatprep.subr.mxu0 0.0
        %687 = vmatpush2.msra.mxu0 0.0
        %688 = vmatprep.subr.mxu0 0.0
        %689 = vmatpush2.msra.mxu0 0.0
        %690 = vmatprep.subr.mxu0 0.0
        %691 = vmatpush2.msra.mxu0 0.0
        %692 = vmatprep.mubr.f32.mxu0 0.0
        %693 = vmatmul.mubr.f32.gmra.mxu0 %v626
        %v694 = vpop.f32.mrf.mxu0
        %v695 = vadd.f32 0.0, %v694
        %v696 = vpop.f32.mrf.mxu0
        %697 = vdwg.mxu0
        %v698 = vadd.f32 %v624, %v695
        %699 = vst.msk [vmem:[#allocation5] sm:$0xff] %vm516, %v698
        %700 = vst.msk [vmem:[#allocation3] sm:$0xff] %vm616, %v598
        // Predicated region
        $region65: #{tpu_custom_call.1} parent=39 // pred_check
          %p701 = pneg %p331
        $region66: #{tpu_custom_call.1} parent=39 // pred_check_branch
          %703 = sbr.rel (%p701) target = $region68
        $region67: #{tpu_custom_call.1} parent=39 // pred_region
          %v704 = vld [vmem:[#allocation5] sm:$0xff]
          %v705 = vld [vmem:[#allocation4] sm:$0xff]
          %v706 = vrcp.pop %v705
          %708 = vset.pattern.permute.xlu0 0
          %709 = vperm.xlu0 %708, %v706
          %v710 = vpop.permute.xlu0 %709
          %v712 = vmul.f32 %v704, %v710
          %v713 = vsel %vm516, %v712, 0.0
          %v714 = vrot.slane %v713, 4
          %v715 = vadd.f32 %v713, %v714
          %v716 = vrot.slane %v715, 2
          %v717 = vadd.f32 %v715, %v716
          %v718 = vrot.slane %v717, 1
          %v719 = vadd.f32 %v717, %v718
          %v720 = vmul.f32 %v719, 0.125
          %v721 = vld [vmem:[#allocation12] sm:$0xff]
          %v722 = vld [vmem:[#allocation12 + $0x8] sm:$0xff]
          %v723 = vld [vmem:[#allocation12 + $0x10] sm:$0xff]
          %v724 = vld [vmem:[#allocation12 + $0x18] sm:$0xff]
          %v726 = vsel %vm516, %v720, 0
          %728 = vmatprep.subr.mxu0 0.0
          %729 = vmatpush1.msra.mxu0 0.0
          %730 = vmatprep.subr.mxu0 0.0
          %731 = vmatpush1.msra.mxu0 0.0
          %732 = vmatprep.subr.mxu0 0.0
          %733 = vmatpush1.msra.mxu0 0.0
          %734 = vmatprep.subr.mxu0 0.0
          %735 = vmatpush1.msra.mxu0 0.0
          %736 = vmatprep.subr.mxu0 0.0
          %737 = vmatpush1.msra.mxu0 0.0
          %738 = vmatprep.subr.mxu0 0.0
          %739 = vmatpush1.msra.mxu0 0.0
          %740 = vmatprep.subr.mxu0 0.0
          %741 = vmatpush1.msra.mxu0 0.0
          %742 = vmatprep.subr.mxu0 0.0
          %743 = vmatpush1.msra.mxu0 0.0
          %744 = vmatprep.subr.mxu0 0.0
          %745 = vmatpush1.msra.mxu0 0.0
          %746 = vmatprep.subr.mxu0 0.0
          %747 = vmatpush1.msra.mxu0 0.0
          %748 = vmatprep.subr.mxu0 0.0
          %749 = vmatpush1.msra.mxu0 0.0
          %750 = vmatprep.subr.mxu0 0.0
          %751 = vmatpush1.msra.mxu0 0.0
          %752 = vmatprep.subr.mxu0 0.0
          %753 = vmatpush1.msra.mxu0 %v724
          %754 = vmatprep.subr.mxu0 0.0
          %755 = vmatpush1.msra.mxu0 %v723
          %756 = vmatprep.subr.mxu0 0.0
          %757 = vmatpush1.msra.mxu0 %v722
          %758 = vmatprep.subr.mxu0 0.0
          %759 = vmatpush1.msra.mxu0 %v721
          %760 = vmatprep.subr.mxu0 0.0
          %761 = vmatpush2.msra.mxu0 0.0
          %762 = vmatprep.subr.mxu0 0.0
          %763 = vmatpush2.msra.mxu0 0.0
          %764 = vmatprep.subr.mxu0 0.0
          %765 = vmatpush2.msra.mxu0 0.0
          %766 = vmatprep.subr.mxu0 0.0
          %767 = vmatpush2.msra.mxu0 0.0
          %768 = vmatprep.subr.mxu0 0.0
          %769 = vmatpush2.msra.mxu0 0.0
          %770 = vmatprep.subr.mxu0 0.0
          %771 = vmatpush2.msra.mxu0 0.0
          %772 = vmatprep.subr.mxu0 0.0
          %773 = vmatpush2.msra.mxu0 0.0
          %774 = vmatprep.subr.mxu0 0.0
          %775 = vmatpush2.msra.mxu0 0.0
          %776 = vmatprep.subr.mxu0 0.0
          %777 = vmatpush2.msra.mxu0 0.0
          %778 = vmatprep.subr.mxu0 0.0
          %779 = vmatpush2.msra.mxu0 0.0
          %780 = vmatprep.subr.mxu0 0.0
          %781 = vmatpush2.msra.mxu0 0.0
          %782 = vmatprep.subr.mxu0 0.0
          %783 = vmatpush2.msra.mxu0 0.0
          %784 = vmatprep.subr.mxu0 0.0
          %785 = vmatpush2.msra.mxu0 0.0
          %786 = vmatprep.subr.mxu0 0.0
          %787 = vmatpush2.msra.mxu0 0.0
          %788 = vmatprep.subr.mxu0 0.0
          %789 = vmatpush2.msra.mxu0 0.0
          %790 = vmatprep.subr.mxu0 0.0
          %791 = vmatpush2.msra.mxu0 0.0
          %792 = vmatprep.mubr.f32.mxu0 0.0
          %793 = vmatmul.mubr.f32.gmra.mxu0 %v726
          %v794 = vpop.f32.mrf.mxu0
          %v795 = vadd.f32 0.0, %v794
          %v796 = vpop.f32.mrf.mxu0
          %797 = vdwg.mxu0
          %v798 = vld [vmem:[%s329] sm:$0x1]
          %v799 = vadd.f32 %v798, %v795
          %800 = vst [vmem:[%s329] sm:$0x1] %v799
        $region68: #{tpu_custom_call.1} parent=39 // pred_fallthru
          _
        %s801 = sand.u32 %s172, 1
        %s802 = scalar_lea.sflag [#allocation8], %s801
        %s803 = sand.u32 %s172, 1
        %s804 = scalar_lea.vmem [#allocation14], %s803
        // Predicated region
        $region69: #{tpu_custom_call.1} parent=39 // pred_check
          %p805 = pneg %p182
        $region70: #{tpu_custom_call.1} parent=39 // pred_check_branch
          %807 = sbr.rel (%p805) target = $region72
        $region71: #{tpu_custom_call.1} parent=39 // pred_region
          %s809 = ssub.s32 16, 16
          %810 = vsyncadd %s802, %s809
          %s811 = smul.addr %s31, 16
          %s812 = scalar_lea.hbm %s5, %s811
          %s814 = sshll.u32 %s804, 4
          %s815 = int_to_ptr.vmem [resolvable:$true] %s814
          %817 = dma.vmem_to_hbm [thread:$0]  %s815, 16, %s812, %s802
        $region72: #{tpu_custom_call.1} parent=39 // pred_fallthru
          _
      $region40: #{tpu_custom_call.1} parent=5 // pred_fallthru
        _
      %p818 = scmp.le.s32.totalorder 2, %s21
      // Predicated region
      $region73: #{tpu_custom_call.1} parent=5 // pred_check
        %p819 = pneg %p818
      $region74: #{tpu_custom_call.1} parent=5 // pred_check_branch
        %821 = sbr.rel (%p819) target = $region76
      $region75: #{tpu_custom_call.1} parent=5 // pred_region
        %s822 = ssub.s32 %s21, 2
        // Predicated region
        $region77: #{tpu_custom_call.1} parent=75 // pred_check
          %p823 = pneg %p188
        $region78: #{tpu_custom_call.1} parent=75 // pred_check_branch
          %825 = sbr.rel (%p823) target = $region80
        $region79: #{tpu_custom_call.1} parent=75 // pred_region
          %s826 = sand.u32 %s173, 1
          %s827 = scalar_lea.sflag [#allocation8], %s826
          %s828 = sand.u32 %s173, 1
          %s829 = scalar_lea.vmem [#allocation14], %s828
          %830 = dma.done %s827, 16
        $region80: #{tpu_custom_call.1} parent=75 // pred_fallthru
          _
      $region76: #{tpu_custom_call.1} parent=5 // pred_fallthru
        _
    $region6: #{tpu_custom_call.1} parent=1 // loop_footer
      %s25 = sadd.s32 1, %s21
    $region7: #{tpu_custom_call.1} parent=1 // loop_footer_branch
      %20 = sbr.rel target = $region3
    $region8: #{tpu_custom_call.1} parent=1 // loop_exit
      _
    %831 = vsyncpa [#allocation7], 1
    %s832 = scalar_lea.sflag [#allocation7], 1
    %833 = vsyncpa %s832, 1
    %834 = vsyncpa [#allocation10], 1
    %s835 = scalar_lea.sflag [#allocation10], 1
    %836 = vsyncpa %s835, 1
    %837 = vsyncpa [#allocation13], 1
    %838 = vsyncpa [#allocation8], 1
    %s839 = scalar_lea.sflag [#allocation8], 1
    %840 = vsyncpa %s839, 1

</llo_original>
